<compile_context>
chip_gen: v5e
topology: v5e:2x2
jax: 0.10.0
libtpu: 0.0.40
codegen_flags: <defaults>
</compile_context>

<pallas_src>
import functools

import jax
import jax.numpy as jnp
from jax.experimental import pallas as pl
from jax.experimental.pallas import tpu as pltpu


# ----------------------------------------------------------------------------
# Kernel
# ----------------------------------------------------------------------------
def _coattention2_kernel(*refs, bb, fr, ql, hid, fused, approx_recip):
    if fused:
        v_ref, q_ref, w_ref, b_ref, v_out_ref, q_out_ref = refs
    else:
        v_ref, q_ref, wv_ref, bv_ref, wq_ref, bq_ref, v_out_ref, q_out_ref = refs

    v = v_ref[...]                         # [bb, FR, Dv]  residual path (f32)
    q = q_ref[...]                         # [bb, L,  Dq]
    dv = v.shape[-1]
    dq = q.shape[-1]

    # Fold the per-step batch into MXU rows.
    v2 = v.reshape(bb * fr, dv)
    q2 = q.reshape(bb * ql, dq)

    # ---- FCNet: Linear + ReLU (dropout = identity, weight_norm folded) -----
    if fused:
        # One MXU pass: rows = [v2; q2], cols = [Wv | Wq]  (requires Dv == Dq).
        # Cross blocks (v2@Wq, q2@Wv) and their biases are computed but
        # discarded — at K=N=32 the pass is fixed-cost bound, so this is free.
        w = w_ref[...]                                     # [D, 2H]
        x = jnp.concatenate([v2, q2], axis=0)              # [bb*(FR+L), D]
        if x.dtype != w.dtype:
            x = x.astype(w.dtype)                          # bf16 MXU operands
        fc = jnp.maximum(
            jnp.dot(x, w, preferred_element_type=jnp.float32) + b_ref[...],
            0.0)                                           # [bb*(FR+L), 2H] f32
        v_fc3 = fc[: bb * fr, :hid].reshape(bb, fr, hid)   # [bb, FR, H]
        q_fc3 = fc[bb * fr:, hid:].reshape(bb, ql, hid)    # [bb, L,  H]
    else:
        wv = wv_ref[...]
        wq = wq_ref[...]
        v2m = v2.astype(wv.dtype) if v2.dtype != wv.dtype else v2
        q2m = q2.astype(wq.dtype) if q2.dtype != wq.dtype else q2
        v_fc = jnp.maximum(
            jnp.dot(v2m, wv, preferred_element_type=jnp.float32) + bv_ref[...],
            0.0)
        q_fc = jnp.maximum(
            jnp.dot(q2m, wq, preferred_element_type=jnp.float32) + bq_ref[...],
            0.0)
        v_fc3 = v_fc.reshape(bb, fr, hid)
        q_fc3 = q_fc.reshape(bb, ql, hid)

    # ---- Affinity scores in mat-vec form ------------------------------------
    # aff = v_fc @ q_fc^T is never needed in full:
    #   v_att uses only aff[:, :, 0] -> s_v[b, f] = <v_fc[b, f], q_fc[b, 0]>
    #   q_att uses only aff[:, 0, :] -> s_q[b, l] = <q_fc[b, l], v_fc[b, 0]>
    q_fc0 = q_fc3[:, 0:1, :]                                   # [bb, 1, H]
    v_fc0 = v_fc3[:, 0:1, :]                                   # [bb, 1, H]
    s_v = jnp.sum(v_fc3 * q_fc0, axis=-1, keepdims=True)       # [bb, FR, 1]
    s_q = jnp.sum(q_fc3 * v_fc0, axis=-1, keepdims=True)       # [bb, L, 1]

    # ---- softmax over the frame / token axis (per batch element) ------------
    s_v = s_v - jnp.max(s_v, axis=1, keepdims=True)
    e_v = jnp.exp(s_v)
    v_att = e_v * pl.reciprocal(jnp.sum(e_v, axis=1, keepdims=True),
                                approx=approx_recip)           # [bb, FR, 1]

    s_q = s_q - jnp.max(s_q, axis=1, keepdims=True)
    e_q = jnp.exp(s_q)
    q_att = e_q * pl.reciprocal(jnp.sum(e_q, axis=1, keepdims=True),
                                approx=approx_recip)           # [bb, L, 1]

    # ---- residual-weighted outputs: x * att + x == x * (1 + att) ------------
    v_out_ref[...] = (v * (1.0 + v_att)).astype(v_out_ref.dtype)
    q_out_ref[...] = (q * (1.0 + q_att)).astype(q_out_ref.dtype)


# ----------------------------------------------------------------------------
# Wrapper helpers
# ----------------------------------------------------------------------------
def _chip_info():
    """Returns (tensorcores_per_device, is_v7x); defensively parsed, safe default."""
    try:
        kind = jax.devices()[0].device_kind.lower()
    except Exception:
        return 1, False
    if "v7" in kind:
        return 2, True           # v7x: 2 TensorCores per chip
    if "v4" in kind or "v5p" in kind:
        return 2, False          # megacore: plain "parallel" shards the grid axis
    return 1, False              # v5e / v6e / unknown: grid is a serial loop


def _step_vmem_bytes(bb, fr, dv, ql, dq, hid, x_bytes, w_bytes):
    """Rough per-grid-step VMEM footprint (pipeline buffers + intermediates)."""
    io = bb * (fr * dv + ql * dq) * x_bytes            # one input OR output buffer set
    params = (dv + dq) * hid * w_bytes + 2 * hid * 4
    interm = bb * (fr + ql) * hid * 4 * 2 + 2 * io     # fc activations + temporaries
    return 2 * (2 * io + params) + interm              # double-buffered in + out + params


def _param_spec(shape, nbytes):
    """BlockSpec for a grid-invariant parameter tile.

    Pallas double-buffers every input by default; a grid-invariant parameter
    wastes that second buffer.  Only opt out once the tile is big enough to
    matter (keeps small/demo shapes on the battle-tested default path).
    """
    if nbytes >= (1 << 20):
        return pl.BlockSpec(shape, lambda c: (0, 0), pipeline_mode=pl.Buffered(1))
    return pl.BlockSpec(shape, lambda c: (0, 0))


# ----------------------------------------------------------------------------
# Public entry point
# ----------------------------------------------------------------------------
def coattention2(v, q, wv, bv, wq, bq, *, batch_chunks=None, use_bf16=False,
                 approx_softmax_recip=False):
    B, FR, Dv = v.shape
    Bq, L, Dq = q.shape
    assert Bq == B
    H = wv.shape[1]
    assert wv.shape == (Dv, H) and wq.shape == (Dq, H)
    assert bv.shape == (H,) and bq.shape == (H,)

    num_cores, is_v7x = _chip_info()
    x_bytes = jnp.dtype(v.dtype).itemsize
    w_bytes = 2 if use_bf16 else jnp.dtype(wv.dtype).itemsize

    # Per-step VMEM budget: conservative on v7x (64 MiB total VMEM).
    budget = (24 << 20) if is_v7x else (64 << 20)

    if batch_chunks is None:
        divisors = [d for d in range(1, B + 1) if B % d == 0]
        fitting = [d for d in divisors
                   if _step_vmem_bytes(B // d, FR, Dv, L, Dq, H,
                                       x_bytes, w_bytes) <= budget]
        pool = fitting if fitting else [B]
        # Prefer the fewest steps (biggest block) that still gives every
        # TensorCore work on multi-TC chips; single-TC chips collapse to 1.
        pref = [d for d in pool if d % num_cores == 0]
        batch_chunks = min(pref) if pref else min(pool)
    assert B % batch_chunks == 0, "B must be divisible by batch_chunks"
    bb = B // batch_chunks

    # Dimension semantics: only CORE_PARALLEL actually changes codegen, and it
    # is only useful when there is a second TensorCore to shard onto.
    if num_cores > 1 and batch_chunks > 1 and batch_chunks % num_cores == 0:
        dim_sem = (pltpu.CORE_PARALLEL,) if is_v7x else (pltpu.PARALLEL,)
    else:
        dim_sem = (pltpu.ARBITRARY,)

    need = _step_vmem_bytes(bb, FR, Dv, L, Dq, H, x_bytes, w_bytes)
    vmem_cap = (56 << 20) if is_v7x else (100 << 20)
    vmem_limit = int(min(vmem_cap, max(32 << 20, need + (8 << 20))))

    # ---- parameters: fuse the two FCNet linears into one MXU pass -----------
    fuse_fc = (Dv == Dq)
    w_dtype = jnp.bfloat16 if use_bf16 else wv.dtype   # pre-cast in HBM, not in-kernel
    if fuse_fc:
        w_fused = jnp.concatenate([wv, wq], axis=1).astype(w_dtype)          # (D, 2H)
        b_fused = jnp.concatenate([bv, bq], axis=0).reshape(1, 2 * H)
        b_fused = b_fused.astype(jnp.float32)
        params = (w_fused, b_fused)
        param_specs = [_param_spec((Dv, 2 * H), Dv * 2 * H * w_bytes),
                       _param_spec((1, 2 * H), 2 * H * 4)]
    else:
        params = (wv.astype(w_dtype), bv.reshape(1, H).astype(jnp.float32),
                  wq.astype(w_dtype), bq.reshape(1, H).astype(jnp.float32))
        param_specs = [_param_spec((Dv, H), Dv * H * w_bytes),
                       _param_spec((1, H), H * 4),
                       _param_spec((Dq, H), Dq * H * w_bytes),
                       _param_spec((1, H), H * 4)]

    kernel = functools.partial(_coattention2_kernel, bb=bb, fr=FR, ql=L, hid=H,
                               fused=fuse_fc, approx_recip=approx_softmax_recip)

    out_shapes = (jax.ShapeDtypeStruct((B, FR, Dv), v.dtype),
                  jax.ShapeDtypeStruct((B, L, Dq), q.dtype))

    return pl.pallas_call(
        kernel,
        out_shape=out_shapes,
        grid_spec=pltpu.PrefetchScalarGridSpec(
            num_scalar_prefetch=0,
            grid=(batch_chunks,),
            in_specs=[pl.BlockSpec((bb, FR, Dv), lambda c: (c, 0, 0)),
                      pl.BlockSpec((bb, L, Dq), lambda c: (c, 0, 0))]
                     + param_specs,
            out_specs=[pl.BlockSpec((bb, FR, Dv), lambda c: (c, 0, 0)),
                       pl.BlockSpec((bb, L, Dq), lambda c: (c, 0, 0))],
        ),
        compiler_params=pltpu.CompilerParams(
            dimension_semantics=dim_sem,
            vmem_limit_bytes=vmem_limit),
    )(v, q, *params)


# ----------------------------------------------------------------------------
# Pure-JAX reference (mirrors the PyTorch forward)
# ----------------------------------------------------------------------------
def reference(v, q, wv, bv, wq, bq):
    v_fc = jax.nn.relu(v @ wv + bv)
    q_fc = jax.nn.relu(q @ wq + bq)
    aff = jnp.einsum('bfh,blh->bfl', v_fc, q_fc)
    v_att = jax.nn.softmax(aff, axis=1)[:, :, 0][..., None]
    q_att = jax.nn.softmax(aff, axis=2)[:, 0, :][..., None]
    return v * v_att + v, q * q_att + q


if __name__ == "__main__":
    # Shapes implied by the forward: v [bs, frame_num, v_dim],
    # q [bs, q_len, q_dim], hidden hid_dim.
    B, FR, L, Dv, Dq, H = 4, 16, 8, 32, 32, 32

    key = jax.random.PRNGKey(0)
    kv, kq, kwv, kbv, kwq, kbq, kwq2 = jax.random.split(key, 7)

    v = jax.random.normal(kv, (B, FR, Dv), dtype=jnp.float32)
    q = jax.random.normal(kq, (B, L, Dq), dtype=jnp.float32)

    # Deterministic synthetic parameters (weight_norm folded into the weight).
    wv = jax.random.normal(kwv, (Dv, H), dtype=jnp.float32) * 0.1
    bv = jax.random.normal(kbv, (H,), dtype=jnp.float32) * 0.1
    wq = jax.random.normal(kwq, (Dq, H), dtype=jnp.float32) * 0.1
    bq = jax.random.normal(kbq, (H,), dtype=jnp.float32) * 0.1

    v_exp, q_exp = reference(v, q, wv, bv, wq, bq)

    # 1) Auto config: fused single-MXU-pass FCNet, chip-aware batch_chunks.
    v_out, q_out = coattention2(v, q, wv, bv, wq, bq)
    jax.block_until_ready((v_out, q_out))
    assert jnp.allclose(v_out, v_exp, rtol=1e-5, atol=1e-5), "v_attend mismatch"
    assert jnp.allclose(q_out, q_exp, rtol=1e-5, atol=1e-5), "q_attend mismatch"

    # 2) Explicit 2-step grid (exercises the multi-step pipeline path).
    v_o2, q_o2 = coattention2(v, q, wv, bv, wq, bq, batch_chunks=2)
    jax.block_until_ready((v_o2, q_o2))
    assert jnp.allclose(v_o2, v_exp, rtol=1e-5, atol=1e-5), "v_attend mismatch (chunks=2)"
    assert jnp.allclose(q_o2, q_exp, rtol=1e-5, atol=1e-5), "q_attend mismatch (chunks=2)"

    # 3) bf16 weights pre-cast in the wrapper (v6e/v7x), f32 accumulation.
    v_ob, q_ob = coattention2(v, q, wv, bv, wq, bq, use_bf16=True)
    jax.block_until_ready((v_ob, q_ob))
    assert jnp.allclose(v_ob, v_exp, rtol=5e-2, atol=5e-2), "v_attend mismatch (bf16)"
    assert jnp.allclose(q_ob, q_exp, rtol=5e-2, atol=5e-2), "q_attend mismatch (bf16)"

    # 4) Approximate EUP reciprocal for the softmax divide (production mode).
    v_oa, q_oa = coattention2(v, q, wv, bv, wq, bq, approx_softmax_recip=True)
    jax.block_until_ready((v_oa, q_oa))
    assert jnp.allclose(v_oa, v_exp, rtol=1e-2, atol=1e-2), "v_attend mismatch (approx)"
    assert jnp.allclose(q_oa, q_exp, rtol=1e-2, atol=1e-2), "q_attend mismatch (approx)"

    # 5) Dv != Dq exercises the unfused two-matmul fallback.
    q48 = jax.random.normal(kq, (B, L, 48), dtype=jnp.float32)
    wq48 = jax.random.normal(kwq2, (48, H), dtype=jnp.float32) * 0.1
    v_o5, q_o5 = coattention2(v, q48, wv, bv, wq48, bq)
    v_e5, q_e5 = reference(v, q48, wv, bv, wq48, bq)
    jax.block_until_ready((v_o5, q_o5))
    assert jnp.allclose(v_o5, v_e5, rtol=1e-5, atol=1e-5), "v_attend mismatch (unfused)"
    assert jnp.allclose(q_o5, q_e5, rtol=1e-5, atol=1e-5), "q_attend mismatch (unfused)"

    print("KERNEL_OK")
</pallas_src>

<mosaic_0001>
module attributes {stable_mosaic.version = 11 : i64} {
  func.func @_coattention2_kernel(%arg0: i32, %arg1: memref<4x16x32xf32, #tpu.memory_space<vmem>>, %arg2: memref<4x8x32xf32, #tpu.memory_space<vmem>>, %arg3: memref<32x64xf32, #tpu.memory_space<vmem>>, %arg4: memref<1x64xf32, #tpu.memory_space<vmem>>, %arg5: memref<4x16x32xf32, #tpu.memory_space<vmem>>, %arg6: memref<4x8x32xf32, #tpu.memory_space<vmem>>) attributes {dimension_semantics = [#tpu.dimension_semantics<arbitrary>], iteration_bounds = array<i64: 1>, scalar_prefetch = 0 : i64, scratch_operands = 0 : i64, tpu.core_type = #tpu.core_type<tc>, window_params = [{transform_indices = @transform_0, window_bounds = array<i64: 4, 16, 32>}, {transform_indices = @transform_1, window_bounds = array<i64: 4, 8, 32>}, {pipeline_mode = #tpu.pipeline_mode<synchronous>, transform_indices = @transform_2, window_bounds = array<i64: 32, 64>}, {pipeline_mode = #tpu.pipeline_mode<synchronous>, transform_indices = @transform_3, window_bounds = array<i64: 1, 64>}, {transform_indices = @transform_4, window_bounds = array<i64: 4, 16, 32>}, {transform_indices = @transform_5, window_bounds = array<i64: 4, 8, 32>}]} {
    %c0 = arith.constant 0 : index
    %c0_0 = arith.constant 0 : index
    %c0_1 = arith.constant 0 : index
    %0 = vector.load %arg1[%c0, %c0_0, %c0_1] : memref<4x16x32xf32, #tpu.memory_space<vmem>>, vector<4x16x32xf32>
    %c0_2 = arith.constant 0 : index
    %c0_3 = arith.constant 0 : index
    %c0_4 = arith.constant 0 : index
    %1 = vector.load %arg2[%c0_2, %c0_3, %c0_4] : memref<4x8x32xf32, #tpu.memory_space<vmem>>, vector<4x8x32xf32>
    %2 = vector.shape_cast %0 : vector<4x16x32xf32> to vector<64x32xf32>
    %3 = vector.shape_cast %1 : vector<4x8x32xf32> to vector<32x32xf32>
    %c0_5 = arith.constant 0 : index
    %c0_6 = arith.constant 0 : index
    %4 = vector.load %arg3[%c0_5, %c0_6] : memref<32x64xf32, #tpu.memory_space<vmem>>, vector<32x64xf32>
    %5 = tpu.concatenate %2, %3 in 0 : vector<64x32xf32>, vector<32x32xf32> -> vector<96x32xf32>
    %cst = arith.constant dense<0.000000e+00> : vector<96x64xf32>
    %6 = tpu.matmul %5, %4, %cst {dimension_numbers = #tpu.dot_dimension_numbers<[1], [0], [0], [1], [0, 0, 1, 1], [], []>} : vector<96x32xf32>, vector<32x64xf32>, vector<96x64xf32> -> vector<96x64xf32>
    %c0_7 = arith.constant 0 : index
    %c0_8 = arith.constant 0 : index
    %7 = vector.load %arg4[%c0_7, %c0_8] : memref<1x64xf32, #tpu.memory_space<vmem>>, vector<1x64xf32>
    %8 = vector.broadcast %7 : vector<1x64xf32> to vector<96x64xf32>
    %9 = arith.addf %6, %8 : vector<96x64xf32>
    %cst_9 = arith.constant 0.000000e+00 : f32
    %10 = vector.broadcast %cst_9 : f32 to vector<96x64xf32>
    %11 = arith.maximumf %9, %10 : vector<96x64xf32>
    %12 = vector.extract_strided_slice %11 {offsets = [0, 0], sizes = [64, 32], strides = [1, 1]} : vector<96x64xf32> to vector<64x32xf32>
    %13 = vector.shape_cast %12 : vector<64x32xf32> to vector<4x16x32xf32>
    %14 = vector.extract_strided_slice %11 {offsets = [64, 32], sizes = [32, 32], strides = [1, 1]} : vector<96x64xf32> to vector<32x32xf32>
    %15 = vector.shape_cast %14 : vector<32x32xf32> to vector<4x8x32xf32>
    %16 = vector.extract_strided_slice %15 {offsets = [0, 0, 0], sizes = [4, 1, 32], strides = [1, 1, 1]} : vector<4x8x32xf32> to vector<4x1x32xf32>
    %17 = vector.extract_strided_slice %13 {offsets = [0, 0, 0], sizes = [4, 1, 32], strides = [1, 1, 1]} : vector<4x16x32xf32> to vector<4x1x32xf32>
    %18 = vector.broadcast %16 : vector<4x1x32xf32> to vector<4x16x32xf32>
    %19 = arith.mulf %13, %18 : vector<4x16x32xf32>
    %cst_10 = arith.constant dense<0.000000e+00> : vector<4x16xf32>
    %20 = vector.multi_reduction <add>, %19, %cst_10 [2] : vector<4x16x32xf32> to vector<4x16xf32>
    %21 = vector.shape_cast %20 : vector<4x16xf32> to vector<4x16x1xf32>
    %22 = vector.broadcast %17 : vector<4x1x32xf32> to vector<4x8x32xf32>
    %23 = arith.mulf %15, %22 : vector<4x8x32xf32>
    %cst_11 = arith.constant dense<0.000000e+00> : vector<4x8xf32>
    %24 = vector.multi_reduction <add>, %23, %cst_11 [2] : vector<4x8x32xf32> to vector<4x8xf32>
    %25 = vector.shape_cast %24 : vector<4x8xf32> to vector<4x8x1xf32>
    %cst_12 = arith.constant dense<0xFF800000> : vector<4x1xf32>
    %26 = vector.multi_reduction <maximumf>, %21, %cst_12 [1] : vector<4x16x1xf32> to vector<4x1xf32>
    %27 = vector.shape_cast %26 : vector<4x1xf32> to vector<4x1x1xf32>
    %28 = vector.broadcast %27 : vector<4x1x1xf32> to vector<4x16x1xf32>
    %29 = arith.subf %21, %28 : vector<4x16x1xf32>
    %30 = math.exp %29 : vector<4x16x1xf32>
    %cst_13 = arith.constant dense<0.000000e+00> : vector<4x1xf32>
    %31 = vector.multi_reduction <add>, %30, %cst_13 [1] : vector<4x16x1xf32> to vector<4x1xf32>
    %32 = vector.shape_cast %31 : vector<4x1xf32> to vector<4x1x1xf32>
    %33 = tpu.reciprocal %32 : vector<4x1x1xf32> -> vector<4x1x1xf32>
    %34 = vector.broadcast %33 : vector<4x1x1xf32> to vector<4x16x1xf32>
    %35 = arith.mulf %30, %34 : vector<4x16x1xf32>
    %cst_14 = arith.constant dense<0xFF800000> : vector<4x1xf32>
    %36 = vector.multi_reduction <maximumf>, %25, %cst_14 [1] : vector<4x8x1xf32> to vector<4x1xf32>
    %37 = vector.shape_cast %36 : vector<4x1xf32> to vector<4x1x1xf32>
    %38 = vector.broadcast %37 : vector<4x1x1xf32> to vector<4x8x1xf32>
    %39 = arith.subf %25, %38 : vector<4x8x1xf32>
    %40 = math.exp %39 : vector<4x8x1xf32>
    %cst_15 = arith.constant dense<0.000000e+00> : vector<4x1xf32>
    %41 = vector.multi_reduction <add>, %40, %cst_15 [1] : vector<4x8x1xf32> to vector<4x1xf32>
    %42 = vector.shape_cast %41 : vector<4x1xf32> to vector<4x1x1xf32>
    %43 = tpu.reciprocal %42 : vector<4x1x1xf32> -> vector<4x1x1xf32>
    %44 = vector.broadcast %43 : vector<4x1x1xf32> to vector<4x8x1xf32>
    %45 = arith.mulf %40, %44 : vector<4x8x1xf32>
    %cst_16 = arith.constant 1.000000e+00 : f32
    %46 = vector.broadcast %cst_16 : f32 to vector<4x16x1xf32>
    %47 = arith.addf %46, %35 : vector<4x16x1xf32>
    %48 = vector.broadcast %47 : vector<4x16x1xf32> to vector<4x16x32xf32>
    %49 = arith.mulf %0, %48 : vector<4x16x32xf32>
    %c0_17 = arith.constant 0 : index
    %c0_18 = arith.constant 0 : index
    %c0_19 = arith.constant 0 : index
    %50 = vector.load %arg5[%c0_17, %c0_18, %c0_19] : memref<4x16x32xf32, #tpu.memory_space<vmem>>, vector<4x16x32xf32>
    tpu.vector_store %arg5[%c0_17, %c0_18, %c0_19], %49 {strides = array<i32>} : memref<4x16x32xf32, #tpu.memory_space<vmem>>, vector<4x16x32xf32>,
    %cst_20 = arith.constant 1.000000e+00 : f32
    %51 = vector.broadcast %cst_20 : f32 to vector<4x8x1xf32>
    %52 = arith.addf %51, %45 : vector<4x8x1xf32>
    %53 = vector.broadcast %52 : vector<4x8x1xf32> to vector<4x8x32xf32>
    %54 = arith.mulf %1, %53 : vector<4x8x32xf32>
    %c0_21 = arith.constant 0 : index
    %c0_22 = arith.constant 0 : index
    %c0_23 = arith.constant 0 : index
    %55 = vector.load %arg6[%c0_21, %c0_22, %c0_23] : memref<4x8x32xf32, #tpu.memory_space<vmem>>, vector<4x8x32xf32>
    tpu.vector_store %arg6[%c0_21, %c0_22, %c0_23], %54 {strides = array<i32>} : memref<4x8x32xf32, #tpu.memory_space<vmem>>, vector<4x8x32xf32>,
    return
  }
  func.func @transform_0(%arg0: i32) -> (i32, i32, i32) {
    %c0_i32 = arith.constant 0 : i32
    %c0_i32_0 = arith.constant 0 : i32
    %c0_i32_1 = arith.constant 0 : i32
    return %arg0, %c0_i32, %c0_i32_0 : i32, i32, i32
  }
  func.func @transform_1(%arg0: i32) -> (i32, i32, i32) {
    %c0_i32 = arith.constant 0 : i32
    %c0_i32_0 = arith.constant 0 : i32
    %c0_i32_1 = arith.constant 0 : i32
    return %arg0, %c0_i32, %c0_i32_0 : i32, i32, i32
  }
  func.func @transform_2(%arg0: i32) -> (i32, i32) {
    %c0_i32 = arith.constant 0 : i32
    %c0_i32_0 = arith.constant 0 : i32
    %c0_i32_1 = arith.constant 0 : i32
    return %c0_i32, %c0_i32_0 : i32, i32
  }
  func.func @transform_3(%arg0: i32) -> (i32, i32) {
    %c0_i32 = arith.constant 0 : i32
    %c0_i32_0 = arith.constant 0 : i32
    %c0_i32_1 = arith.constant 0 : i32
    return %c0_i32, %c0_i32_0 : i32, i32
  }
  func.func @transform_4(%arg0: i32) -> (i32, i32, i32) {
    %c0_i32 = arith.constant 0 : i32
    %c0_i32_0 = arith.constant 0 : i32
    %c0_i32_1 = arith.constant 0 : i32
    return %arg0, %c0_i32, %c0_i32_0 : i32, i32, i32
  }
  func.func @transform_5(%arg0: i32) -> (i32, i32, i32) {
    %c0_i32 = arith.constant 0 : i32
    %c0_i32_0 = arith.constant 0 : i32
    %c0_i32_1 = arith.constant 0 : i32
    return %arg0, %c0_i32, %c0_i32_0 : i32, i32, i32
  }
}

</mosaic_0001>

<llo_original>
// kernel: tpu_custom_call.1
$region0: #{tpu_custom_call.1}
  #allocation0 [shape = 'u32[]', space=smem, size = 0x4, offset = 0x4, fixed_abs, tag = 'smem constant byte address 0x4 - core index']
  #allocation1 [shape = 'u32[72,128]{1,0:T(1,128)}', space=vmem, size = 0x9000, scoped, tag = 'internal scratch']
  %s0 = inlined_call_operand.hbm [shape: f32[4,16,32], index: 0, kind: input, shape index: {}]
  %s1 = inlined_call_operand.hbm [shape: f32[4,8,32], index: 1, kind: input, shape index: {}]
  %s2 = inlined_call_operand.hbm [shape: f32[32,64], index: 2, kind: input, shape index: {}]
  %s3 = inlined_call_operand.vmem [shape: f32[1,64], index: 3, kind: input, shape index: {}]
  %s4 = inlined_call_operand.hbm [shape: f32[4,16,32], index: 4, kind: output, shape index: {0}]
  %s5 = inlined_call_operand.hbm [shape: f32[4,8,32], index: 5, kind: output, shape index: {1}]
  %6 = xla_tuple %s4, %s5
  %s7 = sld [smem:[#allocation0]]
  $region46: #{tpu_custom_call.1} parent=0
    _
  %s9 = ssub.s32 1, %s7
  %s10 = scalar_select 0, %s9, %s7
  $region1: #{tpu_custom_call.1} parent=0
    #allocation2 [shape = 'u8[32768]{0}', space=vmem, size = 0x8000, scoped, tag = 'input window, operand 0, single buffered']
    #allocation3 [shape = 's32[1]{0}', space=sflag, size = 0x4, scoped, tag = 'scoped memory for tpu_custom_call.1']
    #allocation4 [shape = 's32[1]{0}', space=sflag, size = 0x4, scoped, tag = 'scoped memory for tpu_custom_call.1']
    #allocation5 [shape = 'u8[16384]{0}', space=vmem, size = 0x4000, scoped, tag = 'input window, operand 1, single buffered']
    #allocation6 [shape = 's32[1]{0}', space=sflag, size = 0x4, scoped, tag = 'scoped memory for tpu_custom_call.1']
    #allocation7 [shape = 'u8[16384]{0}', space=vmem, size = 0x4000, scoped, tag = 'input window, operand 2, single buffered']
    #allocation8 [shape = 'u8[32768]{0}', space=vmem, size = 0x8000, scoped, tag = 'output window, operand 0, single buffered']
    #allocation9 [shape = 'u8[16384]{0}', space=vmem, size = 0x4000, scoped, tag = 'output window, operand 1, single buffered']
    #allocation10 [shape = 's32[1]{0}', space=sflag, size = 0x4, scoped, tag = 'scoped memory for tpu_custom_call.1']
    %11 = vsyncpa [#allocation3], 0
    %12 = vsyncpa [#allocation6], 0
    %13 = vsyncpa [#allocation4], 0
    %14 = vsyncpa [#allocation10], 0
    // Predicated region
    $region2: #{tpu_custom_call.1} parent=1 // pred_check
      _
    $region3: #{tpu_custom_call.1} parent=1 // pred_check_branch
      %16 = sbr.rel (0) target = $region5
    $region4: #{tpu_custom_call.1} parent=1 // pred_region
      %18 = vsyncadd [#allocation3], 0
      %s19 = sshll.u32 %s0, 4
      %s20 = int_to_ptr.hbm [resolvable:$true] %s19
      %s21 = sshll.u32 [#allocation2], 4
      %s22 = int_to_ptr.vmem [resolvable:$true] %s21
      %27 = dma.hbm_to_vmem [thread:$0]  %s20, 1024, %s22, [#allocation3], 128, 128, 8
    $region5: #{tpu_custom_call.1} parent=1 // pred_fallthru
      _
    // Predicated region
    $region6: #{tpu_custom_call.1} parent=1 // pred_check
      _
    $region7: #{tpu_custom_call.1} parent=1 // pred_check_branch
      %29 = sbr.rel (0) target = $region9
    $region8: #{tpu_custom_call.1} parent=1 // pred_region
      %31 = vsyncadd [#allocation6], 0
      %s32 = sshll.u32 %s1, 4
      %s33 = int_to_ptr.hbm [resolvable:$true] %s32
      %s34 = sshll.u32 [#allocation5], 4
      %s35 = int_to_ptr.vmem [resolvable:$true] %s34
      %40 = dma.hbm_to_vmem [thread:$0]  %s33, 512, %s35, [#allocation6], 128, 128, 8
    $region9: #{tpu_custom_call.1} parent=1 // pred_fallthru
      _
    // Predicated region
    $region10: #{tpu_custom_call.1} parent=1 // pred_check
      _
    $region11: #{tpu_custom_call.1} parent=1 // pred_check_branch
      %42 = sbr.rel (0) target = $region13
    $region12: #{tpu_custom_call.1} parent=1 // pred_region
      %44 = vsyncadd [#allocation6], 0
      %s45 = sshll.u32 %s2, 4
      %s46 = int_to_ptr.hbm [resolvable:$true] %s45
      %s47 = sshll.u32 [#allocation7], 4
      %s48 = int_to_ptr.vmem [resolvable:$true] %s47
      %53 = dma.hbm_to_vmem [thread:$0]  %s46, 512, %s48, [#allocation6], 128, 128, 8
    $region13: #{tpu_custom_call.1} parent=1 // pred_fallthru
      _
    // Predicated region
    $region14: #{tpu_custom_call.1} parent=1 // pred_check
      _
    $region15: #{tpu_custom_call.1} parent=1 // pred_check_branch
      %55 = sbr.rel (0) target = $region17
    $region16: #{tpu_custom_call.1} parent=1 // pred_region
      _
    $region17: #{tpu_custom_call.1} parent=1 // pred_fallthru
      _
    // Predicated region
    $region18: #{tpu_custom_call.1} parent=1 // pred_check
      _
    $region19: #{tpu_custom_call.1} parent=1 // pred_check_branch
      %57 = sbr.rel (0) target = $region21
    $region20: #{tpu_custom_call.1} parent=1 // pred_region
      %59 = dma.done [#allocation3], 1024
    $region21: #{tpu_custom_call.1} parent=1 // pred_fallthru
      _
    // Predicated region
    $region22: #{tpu_custom_call.1} parent=1 // pred_check
      _
    $region23: #{tpu_custom_call.1} parent=1 // pred_check_branch
      %61 = sbr.rel (0) target = $region25
    $region24: #{tpu_custom_call.1} parent=1 // pred_region
      %63 = dma.done [#allocation6], 512
    $region25: #{tpu_custom_call.1} parent=1 // pred_fallthru
      _
    // Predicated region
    $region26: #{tpu_custom_call.1} parent=1 // pred_check
      _
    $region27: #{tpu_custom_call.1} parent=1 // pred_check_branch
      %65 = sbr.rel (0) target = $region29
    $region28: #{tpu_custom_call.1} parent=1 // pred_region
      %67 = dma.done [#allocation6], 512
    $region29: #{tpu_custom_call.1} parent=1 // pred_fallthru
      _
    %v68 = vld [vmem:[#allocation2] sm:$0xff]
    %v69 = vld [vmem:[#allocation2 + $0x8] sm:$0xff]
    %v70 = vld [vmem:[#allocation2 + $0x10] sm:$0xff]
    %v71 = vld [vmem:[#allocation2 + $0x18] sm:$0xff]
    %v72 = vld [vmem:[#allocation2 + $0x20] sm:$0xff]
    %v73 = vld [vmem:[#allocation2 + $0x28] sm:$0xff]
    %v74 = vld [vmem:[#allocation2 + $0x30] sm:$0xff]
    %v75 = vld [vmem:[#allocation2 + $0x38] sm:$0xff]
    %v76 = vld [vmem:[#allocation5] sm:$0xff]
    %v77 = vld [vmem:[#allocation5 + $0x8] sm:$0xff]
    %v78 = vld [vmem:[#allocation5 + $0x10] sm:$0xff]
    %v79 = vld [vmem:[#allocation5 + $0x18] sm:$0xff]
    %v80 = vld [vmem:[#allocation7] sm:$0xff]
    %v81 = vld [vmem:[#allocation7 + $0x8] sm:$0xff]
    %v82 = vld [vmem:[#allocation7 + $0x10] sm:$0xff]
    %v83 = vld [vmem:[#allocation7 + $0x18] sm:$0xff]
    %v84 = vld [vmem:[%s3] sm:$0x1]
    %v86 = vperm.slane %v84, 0
    %vm88 = vcmask 261120
    %v90 = vsel %vm88, %v68, 0
    %v93 = vsel %vm88, %v69, 0
    %v96 = vsel %vm88, %v70, 0
    %v99 = vsel %vm88, %v71, 0
    %v102 = vsel %vm88, %v72, 0
    %v105 = vsel %vm88, %v73, 0
    %v108 = vsel %vm88, %v74, 0
    %v111 = vsel %vm88, %v75, 0
    %v114 = vsel %vm88, %v76, 0
    %v117 = vsel %vm88, %v77, 0
    %v120 = vsel %vm88, %v78, 0
    %v123 = vsel %vm88, %v79, 0
    %125 = vmatpush.msra.mxu0 0.0
    %126 = vmatpush.msra.mxu0 0.0
    %127 = vmatpush.msra.mxu0 0.0
    %128 = vmatpush.msra.mxu0 0.0
    %129 = vmatpush.msra.mxu0 0.0
    %130 = vmatpush.msra.mxu0 0.0
    %131 = vmatpush.msra.mxu0 0.0
    %132 = vmatpush.msra.mxu0 0.0
    %133 = vmatpush.msra.mxu0 0.0
    %134 = vmatpush.msra.mxu0 0.0
    %135 = vmatpush.msra.mxu0 0.0
    %136 = vmatpush.msra.mxu0 0.0
    %137 = vmatpush.msra.mxu0 %v83
    %138 = vmatpush.msra.mxu0 %v82
    %139 = vmatpush.msra.mxu0 %v81
    %140 = vmatpush.msra.mxu0 %v80
    %141 = vmatmul.f32.gmra.mxu0 %v90
    %v142 = vpop.f32.mrf.mxu0
    %v143 = vadd.f32 %v86, %v142
    %144 = vmatmul.f32.gmra.mxu0 %v93
    %v145 = vpop.f32.mrf.mxu0
    %v146 = vadd.f32 %v86, %v145
    %147 = vmatmul.f32.gmra.mxu0 %v96
    %v148 = vpop.f32.mrf.mxu0
    %v149 = vadd.f32 %v86, %v148
    %150 = vmatmul.f32.gmra.mxu0 %v99
    %v151 = vpop.f32.mrf.mxu0
    %v152 = vadd.f32 %v86, %v151
    %153 = vmatmul.f32.gmra.mxu0 %v102
    %v154 = vpop.f32.mrf.mxu0
    %v155 = vadd.f32 %v86, %v154
    %156 = vmatmul.f32.gmra.mxu0 %v105
    %v157 = vpop.f32.mrf.mxu0
    %v158 = vadd.f32 %v86, %v157
    %159 = vmatmul.f32.gmra.mxu0 %v108
    %v160 = vpop.f32.mrf.mxu0
    %v161 = vadd.f32 %v86, %v160
    %162 = vmatmul.f32.gmra.mxu0 %v111
    %v163 = vpop.f32.mrf.mxu0
    %v164 = vadd.f32 %v86, %v163
    %165 = vmatmul.f32.gmra.mxu0 %v114
    %v166 = vpop.f32.mrf.mxu0
    %v167 = vadd.f32 %v86, %v166
    %168 = vmatmul.f32.gmra.mxu0 %v117
    %v169 = vpop.f32.mrf.mxu0
    %v170 = vadd.f32 %v86, %v169
    %171 = vmatmul.f32.gmra.mxu0 %v120
    %v172 = vpop.f32.mrf.mxu0
    %v173 = vadd.f32 %v86, %v172
    %174 = vmatmul.f32.gmra.mxu0 %v123
    %v175 = vpop.f32.mrf.mxu0
    %v176 = vadd.f32 %v86, %v175
    %177 = vdwg.mxu0
    %v178 = vmax.f32 %v143, 0.0
    %v179 = vmax.f32 %v146, 0.0
    %v180 = vmax.f32 %v149, 0.0
    %v181 = vmax.f32 %v152, 0.0
    %v182 = vmax.f32 %v155, 0.0
    %v183 = vmax.f32 %v158, 0.0
    %v184 = vmax.f32 %v161, 0.0
    %v185 = vmax.f32 %v164, 0.0
    %v186 = vmax.f32 %v167, 0.0
    %v187 = vmax.f32 %v170, 0.0
    %v188 = vmax.f32 %v173, 0.0
    %v189 = vmax.f32 %v176, 0.0
    %v190 = vperm.slane %v186, 0
    %v191 = vperm.slane %v187, 0
    %v192 = vperm.slane %v188, 0
    %v193 = vperm.slane %v189, 0
    %198 = vrot.lane.b32.xlu0 %v190, 96
    %v199 = vpop.permute.xlu0 %198
    %200 = vrot.lane.b32.xlu0 %v191, 96
    %v201 = vpop.permute.xlu0 %200
    %202 = vrot.lane.b32.xlu0 %v192, 96
    %v203 = vpop.permute.xlu0 %202
    %204 = vrot.lane.b32.xlu0 %v193, 96
    %v205 = vpop.permute.xlu0 %204
    %v210 = vmul.f32 %v178, %v199
    %v211 = vmul.f32 %v179, %v199
    %v212 = vmul.f32 %v180, %v201
    %v213 = vmul.f32 %v181, %v201
    %v214 = vmul.f32 %v182, %v203
    %v215 = vmul.f32 %v183, %v203
    %v216 = vmul.f32 %v184, %v205
    %v217 = vmul.f32 %v185, %v205
    %v218 = vsel %vm88, %v210, 0.0
    %219 = vadd.xlane.f32.xlu0 %v218
    %v220 = vpop.xlane.xlu0 %219
    %v221 = vsel %vm88, %v211, 0.0
    %222 = vadd.xlane.f32.xlu0 %v221
    %v223 = vpop.xlane.xlu0 %222
    %v224 = vsel %vm88, %v212, 0.0
    %225 = vadd.xlane.f32.xlu0 %v224
    %v226 = vpop.xlane.xlu0 %225
    %v227 = vsel %vm88, %v213, 0.0
    %228 = vadd.xlane.f32.xlu0 %v227
    %v229 = vpop.xlane.xlu0 %228
    %v230 = vsel %vm88, %v214, 0.0
    %231 = vadd.xlane.f32.xlu0 %v230
    %v232 = vpop.xlane.xlu0 %231
    %v233 = vsel %vm88, %v215, 0.0
    %234 = vadd.xlane.f32.xlu0 %v233
    %v235 = vpop.xlane.xlu0 %234
    %v236 = vsel %vm88, %v216, 0.0
    %237 = vadd.xlane.f32.xlu0 %v236
    %v238 = vpop.xlane.xlu0 %237
    %v239 = vsel %vm88, %v217, 0.0
    %240 = vadd.xlane.f32.xlu0 %v239
    %v241 = vpop.xlane.xlu0 %240
    %v242 = vperm.slane %v178, 0
    %v243 = vperm.slane %v180, 0
    %v244 = vperm.slane %v182, 0
    %v245 = vperm.slane %v184, 0
    %250 = vrot.lane.b32.xlu0 %v242, 32
    %v251 = vpop.permute.xlu0 %250
    %252 = vrot.lane.b32.xlu0 %v243, 32
    %v253 = vpop.permute.xlu0 %252
    %254 = vrot.lane.b32.xlu0 %v244, 32
    %v255 = vpop.permute.xlu0 %254
    %256 = vrot.lane.b32.xlu0 %v245, 32
    %v257 = vpop.permute.xlu0 %256
    %v262 = vmul.f32 %v186, %v251
    %v263 = vmul.f32 %v187, %v253
    %v264 = vmul.f32 %v188, %v255
    %v265 = vmul.f32 %v189, %v257
    %270 = vrot.lane.b32.xlu0 %v262, 96
    %v271 = vpop.permute.xlu0 %270
    %272 = vrot.lane.b32.xlu0 %v263, 96
    %v273 = vpop.permute.xlu0 %272
    %274 = vrot.lane.b32.xlu0 %v264, 96
    %v275 = vpop.permute.xlu0 %274
    %276 = vrot.lane.b32.xlu0 %v265, 96
    %v277 = vpop.permute.xlu0 %276
    %v282 = vsel %vm88, %v271, 0.0
    %283 = vadd.xlane.f32.xlu0 %v282
    %v284 = vpop.xlane.xlu0 %283
    %v285 = vsel %vm88, %v273, 0.0
    %286 = vadd.xlane.f32.xlu0 %v285
    %v287 = vpop.xlane.xlu0 %286
    %v288 = vsel %vm88, %v275, 0.0
    %289 = vadd.xlane.f32.xlu0 %v288
    %v290 = vpop.xlane.xlu0 %289
    %v291 = vsel %vm88, %v277, 0.0
    %292 = vadd.xlane.f32.xlu0 %v291
    %v293 = vpop.xlane.xlu0 %292
    %v294 = vmax.f32 %v220, %v223
    %v295 = vrot.slane %v294, 4
    %v296 = vmax.f32 %v294, %v295
    %v297 = vrot.slane %v296, 2
    %v298 = vmax.f32 %v296, %v297
    %v299 = vrot.slane %v298, 1
    %v300 = vmax.f32 %v298, %v299
    %v301 = vmax.f32 %v226, %v229
    %v302 = vrot.slane %v301, 4
    %v303 = vmax.f32 %v301, %v302
    %v304 = vrot.slane %v303, 2
    %v305 = vmax.f32 %v303, %v304
    %v306 = vrot.slane %v305, 1
    %v307 = vmax.f32 %v305, %v306
    %v308 = vmax.f32 %v232, %v235
    %v309 = vrot.slane %v308, 4
    %v310 = vmax.f32 %v308, %v309
    %v311 = vrot.slane %v310, 2
    %v312 = vmax.f32 %v310, %v311
    %v313 = vrot.slane %v312, 1
    %v314 = vmax.f32 %v312, %v313
    %v315 = vmax.f32 %v238, %v241
    %v316 = vrot.slane %v315, 4
    %v317 = vmax.f32 %v315, %v316
    %v318 = vrot.slane %v317, 2
    %v319 = vmax.f32 %v317, %v318
    %v320 = vrot.slane %v319, 1
    %v321 = vmax.f32 %v319, %v320
    %v322 = vsub.f32 %v220, %v300
    %v323 = vsub.f32 %v223, %v300
    %v324 = vsub.f32 %v226, %v307
    %v325 = vsub.f32 %v229, %v307
    %v326 = vsub.f32 %v232, %v314
    %v327 = vsub.f32 %v235, %v314
    %v328 = vsub.f32 %v238, %v321
    %v329 = vsub.f32 %v241, %v321
    %v330 = vmul.f32 %v322, 1.442695
    %v331 = vpow.pop %v330
    %v332 = vmul.f32 %v323, 1.442695
    %v333 = vpow.pop %v332
    %v334 = vmul.f32 %v324, 1.442695
    %v335 = vpow.pop %v334
    %v336 = vmul.f32 %v325, 1.442695
    %v337 = vpow.pop %v336
    %v338 = vmul.f32 %v326, 1.442695
    %v339 = vpow.pop %v338
    %v340 = vmul.f32 %v327, 1.442695
    %v341 = vpow.pop %v340
    %v342 = vmul.f32 %v328, 1.442695
    %v343 = vpow.pop %v342
    %v344 = vmul.f32 %v329, 1.442695
    %v345 = vpow.pop %v344
    %v346 = vadd.f32 %v331, %v333
    %v347 = vrot.slane %v346, 4
    %v348 = vadd.f32 %v346, %v347
    %v349 = vrot.slane %v348, 2
    %v350 = vadd.f32 %v348, %v349
    %v351 = vrot.slane %v350, 1
    %v352 = vadd.f32 %v350, %v351
    %v353 = vadd.f32 %v335, %v337
    %v354 = vrot.slane %v353, 4
    %v355 = vadd.f32 %v353, %v354
    %v356 = vrot.slane %v355, 2
    %v357 = vadd.f32 %v355, %v356
    %v358 = vrot.slane %v357, 1
    %v359 = vadd.f32 %v357, %v358
    %v360 = vadd.f32 %v339, %v341
    %v361 = vrot.slane %v360, 4
    %v362 = vadd.f32 %v360, %v361
    %v363 = vrot.slane %v362, 2
    %v364 = vadd.f32 %v362, %v363
    %v365 = vrot.slane %v364, 1
    %v366 = vadd.f32 %v364, %v365
    %v367 = vadd.f32 %v343, %v345
    %v368 = vrot.slane %v367, 4
    %v369 = vadd.f32 %v367, %v368
    %v370 = vrot.slane %v369, 2
    %v371 = vadd.f32 %v369, %v370
    %v372 = vrot.slane %v371, 1
    %v373 = vadd.f32 %v371, %v372
    %v374 = vrcp.pop %v352
    %v375 = vmul.f32 %v352, %v374
    %v376 = vsub.f32 1.0, %v375
    %v377 = vmul.f32 %v374, %v376
    %v378 = vadd.f32 %v374, %v377
    %vm379 = vweird.f32 %v352
    %vm380 = vweird.f32 %v374
    %vm381 = vmor %vm379, %vm380
    %v382 = vsel %vm381, %v374, %v378
    %v383 = vand.u32 2147483647, %v352
    %vm384 = vcmp.eq.f32.partialorder %v383, 8.507059e+37
    %v385 = vand.u32 %v352, 2147483648
    %v386 = vor.u32 1.1754944e-38, %v385
    %v387 = vsel %vm384, %v386, %v382
    %v388 = vrcp.pop %v359
    %v389 = vmul.f32 %v359, %v388
    %v390 = vsub.f32 1.0, %v389
    %v391 = vmul.f32 %v388, %v390
    %v392 = vadd.f32 %v388, %v391
    %vm393 = vweird.f32 %v359
    %vm394 = vweird.f32 %v388
    %vm395 = vmor %vm393, %vm394
    %v396 = vsel %vm395, %v388, %v392
    %v397 = vand.u32 2147483647, %v359
    %vm398 = vcmp.eq.f32.partialorder %v397, 8.507059e+37
    %v399 = vand.u32 %v359, 2147483648
    %v400 = vor.u32 1.1754944e-38, %v399
    %v401 = vsel %vm398, %v400, %v396
    %v402 = vrcp.pop %v366
    %v403 = vmul.f32 %v366, %v402
    %v404 = vsub.f32 1.0, %v403
    %v405 = vmul.f32 %v402, %v404
    %v406 = vadd.f32 %v402, %v405
    %vm407 = vweird.f32 %v366
    %vm408 = vweird.f32 %v402
    %vm409 = vmor %vm407, %vm408
    %v410 = vsel %vm409, %v402, %v406
    %v411 = vand.u32 2147483647, %v366
    %vm412 = vcmp.eq.f32.partialorder %v411, 8.507059e+37
    %v413 = vand.u32 %v366, 2147483648
    %v414 = vor.u32 1.1754944e-38, %v413
    %v415 = vsel %vm412, %v414, %v410
    %v416 = vrcp.pop %v373
    %v417 = vmul.f32 %v373, %v416
    %v418 = vsub.f32 1.0, %v417
    %v419 = vmul.f32 %v416, %v418
    %v420 = vadd.f32 %v416, %v419
    %vm421 = vweird.f32 %v373
    %vm422 = vweird.f32 %v416
    %vm423 = vmor %vm421, %vm422
    %v424 = vsel %vm423, %v416, %v420
    %v425 = vand.u32 2147483647, %v373
    %vm426 = vcmp.eq.f32.partialorder %v425, 8.507059e+37
    %v427 = vand.u32 %v373, 2147483648
    %v428 = vor.u32 1.1754944e-38, %v427
    %v429 = vsel %vm426, %v428, %v424
    %v430 = vmul.f32 %v331, %v387
    %v431 = vmul.f32 %v333, %v387
    %v432 = vmul.f32 %v335, %v401
    %v433 = vmul.f32 %v337, %v401
    %v434 = vmul.f32 %v339, %v415
    %v435 = vmul.f32 %v341, %v415
    %v436 = vmul.f32 %v343, %v429
    %v437 = vmul.f32 %v345, %v429
    %v438 = vrot.slane %v284, 4
    %v439 = vmax.f32 %v284, %v438
    %v440 = vrot.slane %v439, 2
    %v441 = vmax.f32 %v439, %v440
    %v442 = vrot.slane %v441, 1
    %v443 = vmax.f32 %v441, %v442
    %v444 = vrot.slane %v287, 4
    %v445 = vmax.f32 %v287, %v444
    %v446 = vrot.slane %v445, 2
    %v447 = vmax.f32 %v445, %v446
    %v448 = vrot.slane %v447, 1
    %v449 = vmax.f32 %v447, %v448
    %v450 = vrot.slane %v290, 4
    %v451 = vmax.f32 %v290, %v450
    %v452 = vrot.slane %v451, 2
    %v453 = vmax.f32 %v451, %v452
    %v454 = vrot.slane %v453, 1
    %v455 = vmax.f32 %v453, %v454
    %v456 = vrot.slane %v293, 4
    %v457 = vmax.f32 %v293, %v456
    %v458 = vrot.slane %v457, 2
    %v459 = vmax.f32 %v457, %v458
    %v460 = vrot.slane %v459, 1
    %v461 = vmax.f32 %v459, %v460
    %v462 = vsub.f32 %v284, %v443
    %v463 = vsub.f32 %v287, %v449
    %v464 = vsub.f32 %v290, %v455
    %v465 = vsub.f32 %v293, %v461
    %v466 = vmul.f32 %v462, 1.442695
    %v467 = vpow.pop %v466
    %v468 = vmul.f32 %v463, 1.442695
    %v469 = vpow.pop %v468
    %v470 = vmul.f32 %v464, 1.442695
    %v471 = vpow.pop %v470
    %v472 = vmul.f32 %v465, 1.442695
    %v473 = vpow.pop %v472
    %v474 = vrot.slane %v467, 4
    %v475 = vadd.f32 %v467, %v474
    %v476 = vrot.slane %v475, 2
    %v477 = vadd.f32 %v475, %v476
    %v478 = vrot.slane %v477, 1
    %v479 = vadd.f32 %v477, %v478
    %v480 = vrot.slane %v469, 4
    %v481 = vadd.f32 %v469, %v480
    %v482 = vrot.slane %v481, 2
    %v483 = vadd.f32 %v481, %v482
    %v484 = vrot.slane %v483, 1
    %v485 = vadd.f32 %v483, %v484
    %v486 = vrot.slane %v471, 4
    %v487 = vadd.f32 %v471, %v486
    %v488 = vrot.slane %v487, 2
    %v489 = vadd.f32 %v487, %v488
    %v490 = vrot.slane %v489, 1
    %v491 = vadd.f32 %v489, %v490
    %v492 = vrot.slane %v473, 4
    %v493 = vadd.f32 %v473, %v492
    %v494 = vrot.slane %v493, 2
    %v495 = vadd.f32 %v493, %v494
    %v496 = vrot.slane %v495, 1
    %v497 = vadd.f32 %v495, %v496
    %v498 = vrcp.pop %v479
    %v499 = vmul.f32 %v479, %v498
    %v500 = vsub.f32 1.0, %v499
    %v501 = vmul.f32 %v498, %v500
    %v502 = vadd.f32 %v498, %v501
    %vm503 = vweird.f32 %v479
    %vm504 = vweird.f32 %v498
    %vm505 = vmor %vm503, %vm504
    %v506 = vsel %vm505, %v498, %v502
    %v507 = vand.u32 2147483647, %v479
    %vm508 = vcmp.eq.f32.partialorder %v507, 8.507059e+37
    %v509 = vand.u32 %v479, 2147483648
    %v510 = vor.u32 1.1754944e-38, %v509
    %v511 = vsel %vm508, %v510, %v506
    %v512 = vrcp.pop %v485
    %v513 = vmul.f32 %v485, %v512
    %v514 = vsub.f32 1.0, %v513
    %v515 = vmul.f32 %v512, %v514
    %v516 = vadd.f32 %v512, %v515
    %vm517 = vweird.f32 %v485
    %vm518 = vweird.f32 %v512
    %vm519 = vmor %vm517, %vm518
    %v520 = vsel %vm519, %v512, %v516
    %v521 = vand.u32 2147483647, %v485
    %vm522 = vcmp.eq.f32.partialorder %v521, 8.507059e+37
    %v523 = vand.u32 %v485, 2147483648
    %v524 = vor.u32 1.1754944e-38, %v523
    %v525 = vsel %vm522, %v524, %v520
    %v526 = vrcp.pop %v491
    %v527 = vmul.f32 %v491, %v526
    %v528 = vsub.f32 1.0, %v527
    %v529 = vmul.f32 %v526, %v528
    %v530 = vadd.f32 %v526, %v529
    %vm531 = vweird.f32 %v491
    %vm532 = vweird.f32 %v526
    %vm533 = vmor %vm531, %vm532
    %v534 = vsel %vm533, %v526, %v530
    %v535 = vand.u32 2147483647, %v491
    %vm536 = vcmp.eq.f32.partialorder %v535, 8.507059e+37
    %v537 = vand.u32 %v491, 2147483648
    %v538 = vor.u32 1.1754944e-38, %v537
    %v539 = vsel %vm536, %v538, %v534
    %v540 = vrcp.pop %v497
    %v541 = vmul.f32 %v497, %v540
    %v542 = vsub.f32 1.0, %v541
    %v543 = vmul.f32 %v540, %v542
    %v544 = vadd.f32 %v540, %v543
    %vm545 = vweird.f32 %v497
    %vm546 = vweird.f32 %v540
    %vm547 = vmor %vm545, %vm546
    %v548 = vsel %vm547, %v540, %v544
    %v549 = vand.u32 2147483647, %v497
    %vm550 = vcmp.eq.f32.partialorder %v549, 8.507059e+37
    %v551 = vand.u32 %v497, 2147483648
    %v552 = vor.u32 1.1754944e-38, %v551
    %v553 = vsel %vm550, %v552, %v548
    %v554 = vmul.f32 %v467, %v511
    %v555 = vmul.f32 %v469, %v525
    %v556 = vmul.f32 %v471, %v539
    %v557 = vmul.f32 %v473, %v553
    %v558 = vadd.f32 %v430, 1.0
    %v559 = vadd.f32 %v431, 1.0
    %v560 = vadd.f32 %v432, 1.0
    %v561 = vadd.f32 %v433, 1.0
    %v562 = vadd.f32 %v434, 1.0
    %v563 = vadd.f32 %v435, 1.0
    %v564 = vadd.f32 %v436, 1.0
    %v565 = vadd.f32 %v437, 1.0
    %v566 = vmul.f32 %v68, %v558
    %v567 = vmul.f32 %v69, %v559
    %v568 = vmul.f32 %v70, %v560
    %v569 = vmul.f32 %v71, %v561
    %v570 = vmul.f32 %v72, %v562
    %v571 = vmul.f32 %v73, %v563
    %v572 = vmul.f32 %v74, %v564
    %v573 = vmul.f32 %v75, %v565
    %574 = vst.msk [vmem:[#allocation8] sm:$0xff] %vm88, %v566
    %575 = vst.msk [vmem:[#allocation8 + $0x8] sm:$0xff] %vm88, %v567
    %576 = vst.msk [vmem:[#allocation8 + $0x10] sm:$0xff] %vm88, %v568
    %577 = vst.msk [vmem:[#allocation8 + $0x18] sm:$0xff] %vm88, %v569
    %578 = vst.msk [vmem:[#allocation8 + $0x20] sm:$0xff] %vm88, %v570
    %579 = vst.msk [vmem:[#allocation8 + $0x28] sm:$0xff] %vm88, %v571
    %580 = vst.msk [vmem:[#allocation8 + $0x30] sm:$0xff] %vm88, %v572
    %581 = vst.msk [vmem:[#allocation8 + $0x38] sm:$0xff] %vm88, %v573
    %v582 = vadd.f32 %v554, 1.0
    %v583 = vadd.f32 %v555, 1.0
    %v584 = vadd.f32 %v556, 1.0
    %v585 = vadd.f32 %v557, 1.0
    %v586 = vmul.f32 %v76, %v582
    %v587 = vmul.f32 %v77, %v583
    %v588 = vmul.f32 %v78, %v584
    %v589 = vmul.f32 %v79, %v585
    %590 = vst.msk [vmem:[#allocation9] sm:$0xff] %vm88, %v586
    %591 = vst.msk [vmem:[#allocation9 + $0x8] sm:$0xff] %vm88, %v587
    %592 = vst.msk [vmem:[#allocation9 + $0x10] sm:$0xff] %vm88, %v588
    %593 = vst.msk [vmem:[#allocation9 + $0x18] sm:$0xff] %vm88, %v589
    // Predicated region
    $region30: #{tpu_custom_call.1} parent=1 // pred_check
      _
    $region31: #{tpu_custom_call.1} parent=1 // pred_check_branch
      %595 = sbr.rel (0) target = $region33
    $region32: #{tpu_custom_call.1} parent=1 // pred_region
      %597 = vsyncadd [#allocation4], 0
      %s598 = sshll.u32 [#allocation8], 4
      %s599 = int_to_ptr.vmem [resolvable:$true] %s598
      %s600 = sshll.u32 %s4, 4
      %s601 = int_to_ptr.hbm [resolvable:$true] %s600
      %606 = dma.vmem_to_hbm [thread:$0]  %s599, 1024, %s601, [#allocation4], 128, 128, 8
    $region33: #{tpu_custom_call.1} parent=1 // pred_fallthru
      _
    // Predicated region
    $region34: #{tpu_custom_call.1} parent=1 // pred_check
      _
    $region35: #{tpu_custom_call.1} parent=1 // pred_check_branch
      %608 = sbr.rel (0) target = $region37
    $region36: #{tpu_custom_call.1} parent=1 // pred_region
      %610 = vsyncadd [#allocation10], 0
      %s611 = sshll.u32 [#allocation9], 4
      %s612 = int_to_ptr.vmem [resolvable:$true] %s611
      %s613 = sshll.u32 %s5, 4
      %s614 = int_to_ptr.hbm [resolvable:$true] %s613
      %619 = dma.vmem_to_hbm [thread:$0]  %s612, 512, %s614, [#allocation10], 128, 128, 8
    $region37: #{tpu_custom_call.1} parent=1 // pred_fallthru
      _
    // Predicated region
    $region38: #{tpu_custom_call.1} parent=1 // pred_check
      _
    $region39: #{tpu_custom_call.1} parent=1 // pred_check_branch
      %621 = sbr.rel (0) target = $region41
    $region40: #{tpu_custom_call.1} parent=1 // pred_region
      %623 = dma.done [#allocation4], 1024
    $region41: #{tpu_custom_call.1} parent=1 // pred_fallthru
      _
    // Predicated region
    $region42: #{tpu_custom_call.1} parent=1 // pred_check
      _
    $region43: #{tpu_custom_call.1} parent=1 // pred_check_branch
      %625 = sbr.rel (0) target = $region45
    $region44: #{tpu_custom_call.1} parent=1 // pred_region
      %627 = dma.done [#allocation10], 512
    $region45: #{tpu_custom_call.1} parent=1 // pred_fallthru
      _
    %628 = vsyncpa [#allocation3], 1
    %629 = vsyncpa [#allocation6], 1
    %630 = vsyncpa [#allocation4], 1
    %631 = vsyncpa [#allocation10], 1

</llo_original>
